<compile_context>
chip_gen: v7x
topology: tpu7x:2x2x1
jax: 0.10.0
libtpu: 0.0.40
codegen_flags: <defaults>
</compile_context>

<pallas_src>
import jax
import jax.numpy as jnp
from jax.experimental import pallas as pl
from jax.experimental.pallas import tpu as pltpu


def ds1_kernel(x2_ref, xw_ref, scale_ref, bias_ref, w_ref, o_ref):
    # x2_ref   : (1, C2, thw)          left half of the concat (copied through)
    # xw_ref   : (1, 4*C, thw)         the 4 pooling-window elements, window-major on sublanes
    # scale_ref: (C, 1)   f32          folded eval-mode BN scale
    # bias_ref : (C, 1)   f32          folded eval-mode BN bias
    # w_ref    : (C, outC, 1)          1x1 conv weight column per input channel (f32 or bf16)
    # o_ref    : (1, C2 + outC, thw)   fused concat output (dtype = x2 dtype)
    C = scale_ref.shape[0]
    C2 = x2_ref.shape[1]
    outC = w_ref.shape[1]

    # MaxPool2d(2, 2, ceil_mode=True): 3 full-lane VPU maxes over the 4 window slabs.
    m01 = jnp.maximum(xw_ref[0, 0 * C:1 * C, :], xw_ref[0, 1 * C:2 * C, :])
    m23 = jnp.maximum(xw_ref[0, 2 * C:3 * C, :], xw_ref[0, 3 * C:4 * C, :])
    pooled = jnp.maximum(m01, m23).astype(jnp.float32)           # (C, thw)

    # BatchNorm2d (eval mode, folded) + ReLU, in f32.
    y = jnp.maximum(pooled * scale_ref[...] + bias_ref[...], 0.0)
    # MAC dtype follows the weight dtype (bf16 on v6e/v7x when activations+output
    # are bf16; f32 otherwise -- v5e has no bf16 VPU).
    y = y.astype(w_ref.dtype)

    # 1x1 Conv2d (no bias) as C unrolled outer-product FMAs on the VPU (K is tiny,
    # so the MXU would be wasted); accumulator is lane/sublane dense (outC, thw).
    acc = w_ref[0, :, :] * y[0:1, :]
    for c in range(1, C):
        acc = acc + w_ref[c, :, :] * y[c:c + 1, :]

    # Fused channel concat: out = [x2 ; conv(relu(bn(pool(x1))))]
    o_ref[0, 0:C2, :] = x2_ref[0, :, :].astype(o_ref.dtype)
    o_ref[0, C2:C2 + outC, :] = acc.astype(o_ref.dtype)


def _vmem_budget_and_max_tile():
    """Per-generation tile budget: big tiles on 128-MiB VMEM parts (v5e/v6e),
    smaller on 64-MiB parts (v7x); conservative fallback if the query fails."""
    try:
        vmem_cap = pltpu.get_tpu_info().vmem_capacity_bytes
    except Exception:
        vmem_cap = 64 << 20
    if vmem_cap >= (96 << 20):
        return 32 << 20, 16384        # v5e / v5p / v6e
    return 12 << 20, 4096             # v7x (and unknown)


def _mac_dtype(act_dtype, out_dtype):
    """Packed-bf16 MAC only when activations AND output are bf16 and the chip has a
    bf16 VPU (v6e/v7x).  v5e and older keep the f32 VPU path (per review)."""
    if act_dtype != jnp.bfloat16 or out_dtype != jnp.bfloat16:
        return jnp.float32
    try:
        kind = jax.devices()[0].device_kind.lower()
    except Exception:
        return jnp.float32
    if any(tag in kind for tag in ("v2", "v3", "v4", "v5")):
        return jnp.float32
    return jnp.bfloat16


def _pick_spatial_tile(Sp, N, bytes_per_lane, max_tile, vmem_budget):
    """Largest 128-multiple lane tile that fits the double-buffered VMEM budget and
    does not exceed the spatial extent; split so the parallel grid keeps >= 2 steps
    (v7x megacore) whenever possible.  Sp is guaranteed >= 128 by the caller."""
    cap = max(128, (min(max_tile, vmem_budget // (2 * bytes_per_lane)) // 128) * 128)
    thw = max(128, min(cap, (Sp // 128) * 128))
    if N * pl.cdiv(Sp, thw) < 2 and Sp // 128 >= 2:
        half = pl.cdiv(pl.cdiv(Sp, 2), 128) * 128
        thw = max(128, min(thw, half))
    return thw


def dense_supervision1(x1, x2, conv_w, gamma, beta, run_mean, run_var, eps=1e-5):
    """x1: (N, C, H, W), x2: (N, C2, Ho, Wo), conv_w: (outC, C, 1, 1).
    Output dtype = x2.dtype (x2 passes through bit-exactly; the conv branch is cast).
    TODO(synk): only eval-mode BatchNorm (running statistics) is implemented; the
    training-mode batch-statistics path of nn.BatchNorm2d is not."""
    N, C, H, W = x1.shape
    N2, C2, Ho2, Wo2 = x2.shape
    outC = conv_w.shape[0]
    Ho, Wo = -(-H // 2), -(-W // 2)                 # ceil_mode pooled size
    assert (N2, Ho2, Wo2) == (N, Ho, Wo)
    S = Ho * Wo
    Ctot = C2 + outC
    out_dtype = x2.dtype

    # --- single packing pass over x1: ceil-mode pad + 2x2 window split + lane pad ---
    ph, pw = Ho * 2 - H, Wo * 2 - W
    if ph or pw:
        pad_val = (-jnp.inf if jnp.issubdtype(x1.dtype, jnp.floating)
                   else jnp.iinfo(x1.dtype).min)
        x1 = jnp.pad(x1, ((0, 0), (0, 0), (0, ph), (0, pw)),
                     constant_values=pad_val)
    xw = x1.reshape(N, C, Ho, 2, Wo, 2)
    xw = jnp.transpose(xw, (0, 3, 5, 1, 2, 4)).reshape(N, 4 * C, S)   # dense sublanes
    x2r = x2.reshape(N, C2, S)                                        # free reshape

    Sp = S
    if S < 128:                 # tiny feature maps: pad to one dense 128-lane tile
        Sp = 128
        xw = jnp.pad(xw, ((0, 0), (0, 0), (0, Sp - S)))
        x2r = jnp.pad(x2r, ((0, 0), (0, 0), (0, Sp - S)))

    # --- folded eval-mode BN (f32) + conv weight (MAC dtype may be bf16) ---
    g32 = gamma.astype(jnp.float32)
    inv_std = 1.0 / jnp.sqrt(run_var.astype(jnp.float32) + eps)
    scale = (g32 * inv_std).reshape(C, 1)
    bias = (beta.astype(jnp.float32)
            - run_mean.astype(jnp.float32) * g32 * inv_std).reshape(C, 1)
    mac_dt = _mac_dtype(x1.dtype, out_dtype)
    wcol = conv_w.reshape(outC, C).T.astype(mac_dt).reshape(C, outC, 1)

    # --- lane tile / grid / VMEM limit ---
    bpl = (4 * C * jnp.dtype(x1.dtype).itemsize
           + (C2 + Ctot) * jnp.dtype(out_dtype).itemsize)
    vmem_budget, max_tile = _vmem_budget_and_max_tile()
    thw = _pick_spatial_tile(Sp, N, bpl, max_tile, vmem_budget)
    grid = (N, pl.cdiv(Sp, thw))
    # double-buffered blocks + weights/scale + compiler headroom
    vmem_limit = int(2 * bpl * thw + (8 << 20))

    out = pl.pallas_call(
        ds1_kernel,
        out_shape=jax.ShapeDtypeStruct((N, Ctot, Sp), out_dtype),
        grid_spec=pltpu.PrefetchScalarGridSpec(
            num_scalar_prefetch=0,
            grid=grid,
            in_specs=[
                pl.BlockSpec((1, C2, thw), lambda n, s: (n, 0, s)),       # x2 pass-through
                pl.BlockSpec((1, 4 * C, thw), lambda n, s: (n, 0, s)),    # window slab
                pl.BlockSpec((C, 1), lambda n, s: (0, 0)),                # BN scale
                pl.BlockSpec((C, 1), lambda n, s: (0, 0)),                # BN bias
                pl.BlockSpec((C, outC, 1), lambda n, s: (0, 0, 0)),       # conv weight
            ],
            out_specs=pl.BlockSpec((1, Ctot, thw), lambda n, s: (n, 0, s)),
        ),
        compiler_params=pltpu.CompilerParams(
            dimension_semantics=("parallel", "parallel"),
            vmem_limit_bytes=vmem_limit),
    )(x2r, xw, scale, bias, wcol)

    if Sp != S:
        out = out[:, :, :S]
    return out.reshape(N, Ctot, Ho, Wo)


def _reference(x1, x2, conv_w, gamma, beta, run_mean, run_var, eps=1e-5):
    """Pure-JAX reference mirroring the PyTorch forward (eval-mode BN), in f32."""
    x1 = x1.astype(jnp.float32)
    x2 = x2.astype(jnp.float32)
    N, C, H, W = x1.shape
    Ho, Wo = -(-H // 2), -(-W // 2)
    ph, pw = Ho * 2 - H, Wo * 2 - W
    xp = jnp.pad(x1, ((0, 0), (0, 0), (0, ph), (0, pw)),
                 constant_values=-jnp.inf)
    pooled = xp.reshape(N, C, Ho, 2, Wo, 2).max(axis=(3, 5))      # (N,C,Ho,Wo)
    y = (pooled - run_mean[None, :, None, None]) / \
        jnp.sqrt(run_var[None, :, None, None] + eps)
    y = y * gamma[None, :, None, None] + beta[None, :, None, None]
    y = jnp.maximum(y, 0.0)
    right = jnp.einsum('nchw,oc->nohw', y, conv_w.reshape(conv_w.shape[0], C))
    return jnp.concatenate([x2, right], axis=1)


if __name__ == "__main__":
    key = jax.random.PRNGKey(0)
    ks = jax.random.split(key, 12)

    N, inC, C2, outC = 2, 4, 8, 128

    conv_w = jax.random.normal(ks[0], (outC, inC, 1, 1), jnp.float32) * 0.1
    gamma = 1.0 + 0.1 * jax.random.normal(ks[1], (inC,), jnp.float32)
    beta = 0.1 * jax.random.normal(ks[2], (inC,), jnp.float32)
    run_mean = 0.1 * jax.random.normal(ks[3], (inC,), jnp.float32)
    run_var = jnp.abs(1.0 + 0.1 * jax.random.normal(ks[4], (inC,), jnp.float32))

    def make(k_a, k_b, H, W, dtype=jnp.float32):
        Ho, Wo = -(-H // 2), -(-W // 2)
        a = jax.random.normal(k_a, (N, inC, H, W), jnp.float32).astype(dtype)
        b = jax.random.normal(k_b, (N, C2, Ho, Wo), jnp.float32).astype(dtype)
        return a, b, Ho, Wo

    def run(x1, x2):
        return jax.block_until_ready(
            dense_supervision1(x1, x2, conv_w, gamma, beta, run_mean, run_var))

    # 1) even spatial dims: S = 64 < 128 -> padded dense-128-lane path
    x1, x2, Ho, Wo = make(ks[5], ks[6], 16, 16)
    out = run(x1, x2)
    ref = _reference(x1, x2, conv_w, gamma, beta, run_mean, run_var)
    assert out.shape == (N, C2 + outC, Ho, Wo), out.shape
    assert jnp.allclose(out, ref, atol=1e-4, rtol=1e-4), "f32 even-shape mismatch"

    # 2) ceil_mode path (odd spatial dims)
    x1, x2, Ho, Wo = make(ks[7], ks[8], 15, 15)
    out = run(x1, x2)
    ref = _reference(x1, x2, conv_w, gamma, beta, run_mean, run_var)
    assert out.shape == (N, C2 + outC, Ho, Wo), out.shape
    assert jnp.allclose(out, ref, atol=1e-4, rtol=1e-4), "ceil-mode mismatch"

    # 3) S >= 128 and not a multiple of 128 (boundary-masked final tile): 24x24 -> S=144
    x1, x2, Ho, Wo = make(ks[9], ks[10], 24, 24)
    out = run(x1, x2)
    ref = _reference(x1, x2, conv_w, gamma, beta, run_mean, run_var)
    assert out.shape == (N, C2 + outC, Ho, Wo), out.shape
    assert jnp.allclose(out, ref, atol=1e-4, rtol=1e-4), "non-divisible-S mismatch"

    # 4) bf16 activations + bf16 output (packed-bf16 MAC on v6e/v7x, f32 MAC on v5e)
    x1, x2, Ho, Wo = make(ks[5], ks[6], 16, 16, jnp.bfloat16)
    out = run(x1, x2)
    ref = _reference(x1, x2, conv_w, gamma, beta, run_mean, run_var)
    assert out.dtype == jnp.bfloat16
    assert out.shape == (N, C2 + outC, Ho, Wo), out.shape
    assert jnp.allclose(out.astype(jnp.float32), ref, atol=0.1, rtol=0.1), "bf16 mismatch"

    print("KERNEL_OK")
</pallas_src>

<mosaic_0001>
module attributes {stable_mosaic.version = 11 : i64} {
  func.func @ds1_kernel(%arg0: i32, %arg1: i32, %arg2: memref<1x8x128xf32, #tpu.memory_space<vmem>>, %arg3: memref<1x16x128xf32, #tpu.memory_space<vmem>>, %arg4: memref<4x1xf32, #tpu.memory_space<vmem>>, %arg5: memref<4x1xf32, #tpu.memory_space<vmem>>, %arg6: memref<4x128x1xf32, #tpu.memory_space<vmem>>, %arg7: memref<1x136x128xf32, #tpu.memory_space<vmem>>) attributes {dimension_semantics = [#tpu.dimension_semantics<parallel>, #tpu.dimension_semantics<parallel>], iteration_bounds = array<i64: 2, 1>, scalar_prefetch = 0 : i64, scratch_operands = 0 : i64, tpu.core_type = #tpu.core_type<tc>, window_params = [{transform_indices = @transform_0, window_bounds = array<i64: 1, 8, 128>}, {transform_indices = @transform_1, window_bounds = array<i64: 1, 16, 128>}, {pipeline_mode = #tpu.pipeline_mode<synchronous>, transform_indices = @transform_2, window_bounds = array<i64: 4, 1>}, {pipeline_mode = #tpu.pipeline_mode<synchronous>, transform_indices = @transform_3, window_bounds = array<i64: 4, 1>}, {pipeline_mode = #tpu.pipeline_mode<synchronous>, transform_indices = @transform_4, window_bounds = array<i64: 4, 128, 1>}, {transform_indices = @transform_5, window_bounds = array<i64: 1, 136, 128>}]} {
    %c0 = arith.constant 0 : index
    %c0_0 = arith.constant 0 : index
    %c0_1 = arith.constant 0 : index
    %0 = vector.load %arg3[%c0, %c0_0, %c0_1] : memref<1x16x128xf32, #tpu.memory_space<vmem>>, vector<1x4x128xf32>
    %1 = vector.shape_cast %0 : vector<1x4x128xf32> to vector<4x128xf32>
    %c0_2 = arith.constant 0 : index
    %c4 = arith.constant 4 : index
    %c0_3 = arith.constant 0 : index
    %2 = vector.load %arg3[%c0_2, %c4, %c0_3] : memref<1x16x128xf32, #tpu.memory_space<vmem>>, vector<1x4x128xf32>
    %3 = vector.shape_cast %2 : vector<1x4x128xf32> to vector<4x128xf32>
    %4 = arith.maximumf %1, %3 : vector<4x128xf32>
    %c0_4 = arith.constant 0 : index
    %c8 = arith.constant 8 : index
    %c0_5 = arith.constant 0 : index
    %5 = vector.load %arg3[%c0_4, %c8, %c0_5] : memref<1x16x128xf32, #tpu.memory_space<vmem>>, vector<1x4x128xf32>
    %6 = vector.shape_cast %5 : vector<1x4x128xf32> to vector<4x128xf32>
    %c0_6 = arith.constant 0 : index
    %c12 = arith.constant 12 : index
    %c0_7 = arith.constant 0 : index
    %7 = vector.load %arg3[%c0_6, %c12, %c0_7] : memref<1x16x128xf32, #tpu.memory_space<vmem>>, vector<1x4x128xf32>
    %8 = vector.shape_cast %7 : vector<1x4x128xf32> to vector<4x128xf32>
    %9 = arith.maximumf %6, %8 : vector<4x128xf32>
    %10 = arith.maximumf %4, %9 : vector<4x128xf32>
    %c0_8 = arith.constant 0 : index
    %c0_9 = arith.constant 0 : index
    %11 = vector.load %arg4[%c0_8, %c0_9] : memref<4x1xf32, #tpu.memory_space<vmem>>, vector<4x1xf32>
    %12 = vector.broadcast %11 : vector<4x1xf32> to vector<4x128xf32>
    %13 = arith.mulf %10, %12 : vector<4x128xf32>
    %c0_10 = arith.constant 0 : index
    %c0_11 = arith.constant 0 : index
    %14 = vector.load %arg5[%c0_10, %c0_11] : memref<4x1xf32, #tpu.memory_space<vmem>>, vector<4x1xf32>
    %15 = vector.broadcast %14 : vector<4x1xf32> to vector<4x128xf32>
    %16 = arith.addf %13, %15 : vector<4x128xf32>
    %cst = arith.constant 0.000000e+00 : f32
    %17 = vector.broadcast %cst : f32 to vector<4x128xf32>
    %18 = arith.maximumf %16, %17 : vector<4x128xf32>
    %c0_12 = arith.constant 0 : index
    %c0_13 = arith.constant 0 : index
    %c0_14 = arith.constant 0 : index
    %19 = vector.load %arg6[%c0_12, %c0_13, %c0_14] : memref<4x128x1xf32, #tpu.memory_space<vmem>>, vector<1x128x1xf32>
    %20 = vector.shape_cast %19 : vector<1x128x1xf32> to vector<128x1xf32>
    %21 = vector.extract_strided_slice %18 {offsets = [0, 0], sizes = [1, 128], strides = [1, 1]} : vector<4x128xf32> to vector<1x128xf32>
    %22 = vector.broadcast %20 : vector<128x1xf32> to vector<128x128xf32>
    %23 = vector.broadcast %21 : vector<1x128xf32> to vector<128x128xf32>
    %24 = arith.mulf %22, %23 : vector<128x128xf32>
    %c1 = arith.constant 1 : index
    %c0_15 = arith.constant 0 : index
    %c0_16 = arith.constant 0 : index
    %25 = vector.load %arg6[%c1, %c0_15, %c0_16] : memref<4x128x1xf32, #tpu.memory_space<vmem>>, vector<1x128x1xf32>
    %26 = vector.shape_cast %25 : vector<1x128x1xf32> to vector<128x1xf32>
    %27 = vector.extract_strided_slice %18 {offsets = [1, 0], sizes = [1, 128], strides = [1, 1]} : vector<4x128xf32> to vector<1x128xf32>
    %28 = vector.broadcast %26 : vector<128x1xf32> to vector<128x128xf32>
    %29 = vector.broadcast %27 : vector<1x128xf32> to vector<128x128xf32>
    %30 = arith.mulf %28, %29 : vector<128x128xf32>
    %31 = arith.addf %24, %30 : vector<128x128xf32>
    %c2 = arith.constant 2 : index
    %c0_17 = arith.constant 0 : index
    %c0_18 = arith.constant 0 : index
    %32 = vector.load %arg6[%c2, %c0_17, %c0_18] : memref<4x128x1xf32, #tpu.memory_space<vmem>>, vector<1x128x1xf32>
    %33 = vector.shape_cast %32 : vector<1x128x1xf32> to vector<128x1xf32>
    %34 = vector.extract_strided_slice %18 {offsets = [2, 0], sizes = [1, 128], strides = [1, 1]} : vector<4x128xf32> to vector<1x128xf32>
    %35 = vector.broadcast %33 : vector<128x1xf32> to vector<128x128xf32>
    %36 = vector.broadcast %34 : vector<1x128xf32> to vector<128x128xf32>
    %37 = arith.mulf %35, %36 : vector<128x128xf32>
    %38 = arith.addf %31, %37 : vector<128x128xf32>
    %c3 = arith.constant 3 : index
    %c0_19 = arith.constant 0 : index
    %c0_20 = arith.constant 0 : index
    %39 = vector.load %arg6[%c3, %c0_19, %c0_20] : memref<4x128x1xf32, #tpu.memory_space<vmem>>, vector<1x128x1xf32>
    %40 = vector.shape_cast %39 : vector<1x128x1xf32> to vector<128x1xf32>
    %41 = vector.extract_strided_slice %18 {offsets = [3, 0], sizes = [1, 128], strides = [1, 1]} : vector<4x128xf32> to vector<1x128xf32>
    %42 = vector.broadcast %40 : vector<128x1xf32> to vector<128x128xf32>
    %43 = vector.broadcast %41 : vector<1x128xf32> to vector<128x128xf32>
    %44 = arith.mulf %42, %43 : vector<128x128xf32>
    %45 = arith.addf %38, %44 : vector<128x128xf32>
    %c0_21 = arith.constant 0 : index
    %c0_22 = arith.constant 0 : index
    %c0_23 = arith.constant 0 : index
    %46 = vector.load %arg2[%c0_21, %c0_22, %c0_23] : memref<1x8x128xf32, #tpu.memory_space<vmem>>, vector<1x8x128xf32>
    %47 = vector.shape_cast %46 : vector<1x8x128xf32> to vector<8x128xf32>
    %c0_24 = arith.constant 0 : index
    %c0_25 = arith.constant 0 : index
    %c0_26 = arith.constant 0 : index
    %48 = vector.load %arg7[%c0_24, %c0_25, %c0_26] : memref<1x136x128xf32, #tpu.memory_space<vmem>>, vector<1x8x128xf32>
    %49 = vector.shape_cast %48 : vector<1x8x128xf32> to vector<8x128xf32>
    %50 = vector.shape_cast %47 : vector<8x128xf32> to vector<1x8x128xf32>
    tpu.vector_store %arg7[%c0_24, %c0_25, %c0_26], %50 {strides = array<i32>} : memref<1x136x128xf32, #tpu.memory_space<vmem>>, vector<1x8x128xf32>,
    %c0_27 = arith.constant 0 : index
    %c8_28 = arith.constant 8 : index
    %c0_29 = arith.constant 0 : index
    %51 = vector.load %arg7[%c0_27, %c8_28, %c0_29] : memref<1x136x128xf32, #tpu.memory_space<vmem>>, vector<1x128x128xf32>
    %52 = vector.shape_cast %51 : vector<1x128x128xf32> to vector<128x128xf32>
    %53 = vector.shape_cast %45 : vector<128x128xf32> to vector<1x128x128xf32>
    tpu.vector_store %arg7[%c0_27, %c8_28, %c0_29], %53 {strides = array<i32>} : memref<1x136x128xf32, #tpu.memory_space<vmem>>, vector<1x128x128xf32>,
    return
  }
  func.func @transform_0(%arg0: i32, %arg1: i32) -> (i32, i32, i32) {
    %c0_i32 = arith.constant 0 : i32
    %c0_i32_0 = arith.constant 0 : i32
    return %arg0, %c0_i32, %arg1 : i32, i32, i32
  }
  func.func @transform_1(%arg0: i32, %arg1: i32) -> (i32, i32, i32) {
    %c0_i32 = arith.constant 0 : i32
    %c0_i32_0 = arith.constant 0 : i32
    return %arg0, %c0_i32, %arg1 : i32, i32, i32
  }
  func.func @transform_2(%arg0: i32, %arg1: i32) -> (i32, i32) {
    %c0_i32 = arith.constant 0 : i32
    %c0_i32_0 = arith.constant 0 : i32
    %c0_i32_1 = arith.constant 0 : i32
    return %c0_i32, %c0_i32_0 : i32, i32
  }
  func.func @transform_3(%arg0: i32, %arg1: i32) -> (i32, i32) {
    %c0_i32 = arith.constant 0 : i32
    %c0_i32_0 = arith.constant 0 : i32
    %c0_i32_1 = arith.constant 0 : i32
    return %c0_i32, %c0_i32_0 : i32, i32
  }
  func.func @transform_4(%arg0: i32, %arg1: i32) -> (i32, i32, i32) {
    %c0_i32 = arith.constant 0 : i32
    %c0_i32_0 = arith.constant 0 : i32
    %c0_i32_1 = arith.constant 0 : i32
    %c0_i32_2 = arith.constant 0 : i32
    return %c0_i32, %c0_i32_0, %c0_i32_1 : i32, i32, i32
  }
  func.func @transform_5(%arg0: i32, %arg1: i32) -> (i32, i32, i32) {
    %c0_i32 = arith.constant 0 : i32
    %c0_i32_0 = arith.constant 0 : i32
    return %arg0, %c0_i32, %arg1 : i32, i32, i32
  }
}

</mosaic_0001>

<llo_original>
// kernel: tpu_custom_call.1
$region0: #{tpu_custom_call.1}
  #allocation0 [shape = 'u32[]', space=smem, size = 0x4, offset = 0x4, fixed_abs, tag = 'smem constant byte address 0x4 - core index']
  #allocation1 [shape = 'u32[144,128]{1,0:T(1,128)}', space=vmem, size = 0x12000, scoped, tag = 'internal scratch']
  %s0 = inlined_call_operand.vmem [shape: f32[2,8,128], index: 0, kind: input, shape index: {}]
  %s1 = inlined_call_operand.vmem [shape: f32[2,16,128], index: 1, kind: input, shape index: {}]
  %s2 = inlined_call_operand.vmem [shape: f32[4,1], index: 2, kind: input, shape index: {}]
  %s3 = inlined_call_operand.vmem [shape: f32[4,1], index: 3, kind: input, shape index: {}]
  %s4 = inlined_call_operand.vmem [shape: f32[4,128,1], index: 4, kind: input, shape index: {}]
  %s5 = inlined_call_operand.hbm [shape: f32[2,136,128], index: 5, kind: output, shape index: {}]
  %s6 = sld [smem:[#allocation0]]
  $region53: #{tpu_custom_call.1} parent=0
    _
  %s8 = ssub.s32 1, %s6
  %s9 = scalar_select 0, %s8, %s6
  $region1: #{tpu_custom_call.1} parent=0
    #allocation2 [shape = 'u8[139264]{0}', space=vmem, size = 0x22000, scoped, tag = 'output window, operand 0']
    #allocation3 [shape = 's32[2]{0}', space=sflag, size = 0x8, scoped, tag = 'scoped memory for tpu_custom_call.1']
    %10 = vsyncpa [#allocation3], 0
    %s11 = scalar_lea.sflag [#allocation3], 1
    %12 = vsyncpa %s11, 0
    loop: start=0, step=1, limit=4
    $region2: #{tpu_custom_call.1} parent=1 // loop_pre_header
      _
    $region3: #{tpu_custom_call.1} parent=1 // loop_header
      %s14 = sphi 0, %s18
      %p15 = scmp.ge.s32.totalorder %s14, 4
      %s21 = sphi 0, %s33
      %s22 = sphi 0, %s29
      %s23 = sphi 0, %s21
      %s24 = sphi 0, %s22
      %s25 = sphi 0, %s23
      %s26 = sphi 0, %s24
      %s38 = sphi 0, %s40
      %s41 = sphi 0, %s38
      %s42 = sphi 0, %s41
      %s58 = sphi 0, %s42
      %s66 = sphi 0, %s68
      %s69 = sphi 0, %s66
      %s70 = sphi 0, %s69
      %s86 = sphi 0, %s70
      %s90 = sphi 0, %s90
      %s92 = sphi 0, %s90
      %s93 = sphi 0, %s92
      %s107 = sphi 0, %s93
      %s111 = sphi 0, %s111
      %s113 = sphi 0, %s111
      %s114 = sphi 0, %s113
      %s128 = sphi 0, %s114
      %s132 = sphi 0, %s132
      %s134 = sphi 0, %s132
      %s135 = sphi 0, %s134
      %s149 = sphi 0, %s135
      %s157 = sphi 0, %s159
      %s160 = sphi 0, %s157
      %s161 = sphi 0, %s160
      %s177 = sphi 0, %s161
    $region4: #{tpu_custom_call.1} parent=1 // loop_header_branch
      %17 = sbr.rel (%p15) target = $region8
    $region5: #{tpu_custom_call.1} parent=1 // loop_body
      %s19 = ssub.s32 %s14, 1
      %s20 = ssub.s32 %s14, 2
      %s27 = sadd.s32 1, %s22
      %p28 = scmp.ge.s32.totalorder %s27, 1
      %s29 = scalar_select %p28, 0, %s27
      %s30 = sadd.s32 1, %s21
      %s31 = scalar_select %p28, %s30, %s21
      %p32 = scmp.ge.s32.totalorder %s31, 2
      %s33 = scalar_select %p32, 0, %s31
      %s34 = ssub.s32 %s21, %s33
      %s35 = ssub.s32 %s22, %s29
      %s36 = sor.u32 %s34, %s35
      %p37 = scmp.eq.s32.totalorder %s36, 0
      %s39 = sadd.s32 %s38, 1
      %s40 = scalar_select %p37, %s38, %s39
      %p43 = pneg %p37
      %p44 = scmp.eq.s32.totalorder %s14, 1
      %p45 = por %p43, %p44
      %p46 = scmp.ne.s32.totalorder %s38, %s41
      %p47 = scmp.eq.s32.totalorder %s14, 0
      %p48 = por %p46, %p47
      %p49 = scmp.ne.s32.totalorder %s38, %s41
      %p50 = scmp.eq.s32.totalorder %s19, 1
      %p51 = por %p49, %p50
      %p52 = scmp.ne.s32.totalorder %s41, %s42
      %p53 = scmp.eq.s32.totalorder %s19, 0
      %p54 = por %p52, %p53
      %p55 = scmp.ne.s32.totalorder %s41, %s42
      %p56 = scmp.eq.s32.totalorder %s20, 1
      %p57 = por %p55, %p56
      %p59 = scmp.ne.s32.totalorder %s42, %s58
      %p60 = scmp.eq.s32.totalorder %s20, 0
      %p61 = por %p59, %p60
      %s62 = ssub.s32 %s21, %s33
      %s63 = ssub.s32 %s22, %s29
      %s64 = sor.u32 %s62, %s63
      %p65 = scmp.eq.s32.totalorder %s64, 0
      %s67 = sadd.s32 %s66, 1
      %s68 = scalar_select %p65, %s66, %s67
      %p71 = pneg %p65
      %p72 = scmp.eq.s32.totalorder %s14, 1
      %p73 = por %p71, %p72
      %p74 = scmp.ne.s32.totalorder %s66, %s69
      %p75 = scmp.eq.s32.totalorder %s14, 0
      %p76 = por %p74, %p75
      %p77 = scmp.ne.s32.totalorder %s66, %s69
      %p78 = scmp.eq.s32.totalorder %s19, 1
      %p79 = por %p77, %p78
      %p80 = scmp.ne.s32.totalorder %s69, %s70
      %p81 = scmp.eq.s32.totalorder %s19, 0
      %p82 = por %p80, %p81
      %p83 = scmp.ne.s32.totalorder %s69, %s70
      %p84 = scmp.eq.s32.totalorder %s20, 1
      %p85 = por %p83, %p84
      %p87 = scmp.ne.s32.totalorder %s70, %s86
      %p88 = scmp.eq.s32.totalorder %s20, 0
      %p89 = por %p87, %p88
      %s91 = sadd.s32 %s90, 1
      %p94 = scmp.eq.s32.totalorder %s14, 1
      %p95 = scmp.ne.s32.totalorder %s90, %s92
      %p96 = scmp.eq.s32.totalorder %s14, 0
      %p97 = por %p95, %p96
      %p98 = scmp.ne.s32.totalorder %s90, %s92
      %p99 = scmp.eq.s32.totalorder %s19, 1
      %p100 = por %p98, %p99
      %p101 = scmp.ne.s32.totalorder %s92, %s93
      %p102 = scmp.eq.s32.totalorder %s19, 0
      %p103 = por %p101, %p102
      %p104 = scmp.ne.s32.totalorder %s92, %s93
      %p105 = scmp.eq.s32.totalorder %s20, 1
      %p106 = por %p104, %p105
      %p108 = scmp.ne.s32.totalorder %s93, %s107
      %p109 = scmp.eq.s32.totalorder %s20, 0
      %p110 = por %p108, %p109
      %s112 = sadd.s32 %s111, 1
      %p115 = scmp.eq.s32.totalorder %s14, 1
      %p116 = scmp.ne.s32.totalorder %s111, %s113
      %p117 = scmp.eq.s32.totalorder %s14, 0
      %p118 = por %p116, %p117
      %p119 = scmp.ne.s32.totalorder %s111, %s113
      %p120 = scmp.eq.s32.totalorder %s19, 1
      %p121 = por %p119, %p120
      %p122 = scmp.ne.s32.totalorder %s113, %s114
      %p123 = scmp.eq.s32.totalorder %s19, 0
      %p124 = por %p122, %p123
      %p125 = scmp.ne.s32.totalorder %s113, %s114
      %p126 = scmp.eq.s32.totalorder %s20, 1
      %p127 = por %p125, %p126
      %p129 = scmp.ne.s32.totalorder %s114, %s128
      %p130 = scmp.eq.s32.totalorder %s20, 0
      %p131 = por %p129, %p130
      %s133 = sadd.s32 %s132, 1
      %p136 = scmp.eq.s32.totalorder %s14, 1
      %p137 = scmp.ne.s32.totalorder %s132, %s134
      %p138 = scmp.eq.s32.totalorder %s14, 0
      %p139 = por %p137, %p138
      %p140 = scmp.ne.s32.totalorder %s132, %s134
      %p141 = scmp.eq.s32.totalorder %s19, 1
      %p142 = por %p140, %p141
      %p143 = scmp.ne.s32.totalorder %s134, %s135
      %p144 = scmp.eq.s32.totalorder %s19, 0
      %p145 = por %p143, %p144
      %p146 = scmp.ne.s32.totalorder %s134, %s135
      %p147 = scmp.eq.s32.totalorder %s20, 1
      %p148 = por %p146, %p147
      %p150 = scmp.ne.s32.totalorder %s135, %s149
      %p151 = scmp.eq.s32.totalorder %s20, 0
      %p152 = por %p150, %p151
      %s153 = ssub.s32 %s21, %s33
      %s154 = ssub.s32 %s22, %s29
      %s155 = sor.u32 %s153, %s154
      %p156 = scmp.eq.s32.totalorder %s155, 0
      %s158 = sadd.s32 %s157, 1
      %s159 = scalar_select %p156, %s157, %s158
      %p162 = pneg %p156
      %p163 = scmp.eq.s32.totalorder %s14, 1
      %p164 = por %p162, %p163
      %p165 = scmp.ne.s32.totalorder %s157, %s160
      %p166 = scmp.eq.s32.totalorder %s14, 0
      %p167 = por %p165, %p166
      %p168 = scmp.ne.s32.totalorder %s157, %s160
      %p169 = scmp.eq.s32.totalorder %s19, 1
      %p170 = por %p168, %p169
      %p171 = scmp.ne.s32.totalorder %s160, %s161
      %p172 = scmp.eq.s32.totalorder %s19, 0
      %p173 = por %p171, %p172
      %p174 = scmp.ne.s32.totalorder %s160, %s161
      %p175 = scmp.eq.s32.totalorder %s20, 1
      %p176 = por %p174, %p175
      %p178 = scmp.ne.s32.totalorder %s161, %s177
      %p179 = scmp.eq.s32.totalorder %s20, 0
      %p180 = por %p178, %p179
      %p181 = scmp.le.s32.totalorder 1, %s14
      %p182 = scmp.lt.s32.totalorder %s14, 3
      %p183 = pnand %p181, %p182
      %p184 = pneg %p183
      // Predicated region
      $region9: #{tpu_custom_call.1} parent=5 // pred_check
        _
      $region10: #{tpu_custom_call.1} parent=5 // pred_check_branch
        %186 = sbr.rel (%p183) target = $region12
      $region11: #{tpu_custom_call.1} parent=5 // pred_region
        %s187 = ssub.s32 %s14, 1
        // Predicated region
        $region13: #{tpu_custom_call.1} parent=11 // pred_check
          %p188 = pneg %p103
        $region14: #{tpu_custom_call.1} parent=11 // pred_check_branch
          %190 = sbr.rel (%p188) target = $region16
        $region15: #{tpu_custom_call.1} parent=11 // pred_region
          _
        $region16: #{tpu_custom_call.1} parent=11 // pred_fallthru
          _
        // Predicated region
        $region17: #{tpu_custom_call.1} parent=11 // pred_check
          %p191 = pneg %p124
        $region18: #{tpu_custom_call.1} parent=11 // pred_check_branch
          %193 = sbr.rel (%p191) target = $region20
        $region19: #{tpu_custom_call.1} parent=11 // pred_region
          _
        $region20: #{tpu_custom_call.1} parent=11 // pred_fallthru
          _
        // Predicated region
        $region21: #{tpu_custom_call.1} parent=11 // pred_check
          %p194 = pneg %p145
        $region22: #{tpu_custom_call.1} parent=11 // pred_check_branch
          %196 = sbr.rel (%p194) target = $region24
        $region23: #{tpu_custom_call.1} parent=11 // pred_region
          _
        $region24: #{tpu_custom_call.1} parent=11 // pred_fallthru
          _
      $region12: #{tpu_custom_call.1} parent=5 // pred_fallthru
        _
      %p197 = scmp.lt.s32.totalorder %s14, 2
      // Predicated region
      $region25: #{tpu_custom_call.1} parent=5 // pred_check
        %p198 = pneg %p197
      $region26: #{tpu_custom_call.1} parent=5 // pred_check_branch
        %200 = sbr.rel (%p198) target = $region28
      $region27: #{tpu_custom_call.1} parent=5 // pred_region
        // Predicated region
        $region29: #{tpu_custom_call.1} parent=27 // pred_check
          %p201 = pneg %p48
        $region30: #{tpu_custom_call.1} parent=27 // pred_check_branch
          %203 = sbr.rel (%p201) target = $region32
        $region31: #{tpu_custom_call.1} parent=27 // pred_region
          %p204 = scmp.lt.s32.totalorder %s21, 1
          %s205 = scalar_select %p204, %s21, 1
          %p206 = scmp.lt.s32.totalorder %s22, 0
          %s207 = scalar_select %p206, %s22, 0
          %s208 = sadd.s32 %s207, %s205
          %s209 = smul.addr %s208, 8
          %s210 = scalar_lea.vmem %s0, %s209
        $region32: #{tpu_custom_call.1} parent=27 // pred_fallthru
          _
        // Predicated region
        $region33: #{tpu_custom_call.1} parent=27 // pred_check
          %p211 = pneg %p76
        $region34: #{tpu_custom_call.1} parent=27 // pred_check_branch
          %213 = sbr.rel (%p211) target = $region36
        $region35: #{tpu_custom_call.1} parent=27 // pred_region
          %p214 = scmp.lt.s32.totalorder %s21, 1
          %s215 = scalar_select %p214, %s21, 1
          %p216 = scmp.lt.s32.totalorder %s22, 0
          %s217 = scalar_select %p216, %s22, 0
          %s218 = smul.addr %s215, 2
          %s219 = sadd.s32 %s217, %s218
          %s220 = smul.addr %s219, 8
          %s221 = scalar_lea.vmem %s1, %s220
        $region36: #{tpu_custom_call.1} parent=27 // pred_fallthru
          _
      $region28: #{tpu_custom_call.1} parent=5 // pred_fallthru
        _
      %p222 = scmp.le.s32.totalorder 1, %s14
      %p223 = scmp.lt.s32.totalorder %s14, 3
      %p224 = pnand %p222, %p223
      %p225 = pneg %p224
      // Predicated region
      $region37: #{tpu_custom_call.1} parent=5 // pred_check
        _
      $region38: #{tpu_custom_call.1} parent=5 // pred_check_branch
        %227 = sbr.rel (%p224) target = $region40
      $region39: #{tpu_custom_call.1} parent=5 // pred_region
        %s228 = ssub.s32 %s14, 1
        %p229 = scmp.lt.s32.totalorder %s23, 1
        %s230 = scalar_select %p229, %s23, 1
        %p231 = scmp.lt.s32.totalorder %s24, 0
        %s232 = scalar_select %p231, %s24, 0
        %s233 = sadd.s32 %s232, %s230
        %s234 = smul.addr %s233, 8
        %s235 = scalar_lea.vmem %s0, %s234
        %p236 = pneg %p54
        %p237 = pneg %p51
        %p238 = scmp.lt.s32.totalorder %s23, 1
        %s239 = scalar_select %p238, %s23, 1
        %p240 = scmp.lt.s32.totalorder %s24, 0
        %s241 = scalar_select %p240, %s24, 0
        %s242 = smul.addr %s239, 2
        %s243 = sadd.s32 %s241, %s242
        %s244 = smul.addr %s243, 8
        %s245 = scalar_lea.vmem %s1, %s244
        %p246 = pneg %p82
        %p247 = pneg %p79
        %p248 = pneg %p103
        %p249 = pneg %p100
        %p250 = pneg %p124
        %p251 = pneg %p121
        %p252 = pneg %p145
        %p253 = pneg %p142
        %p254 = pneg %p173
        %p255 = pneg %p170
        %s256 = sand.u32 %s160, 1
        %s257 = scalar_lea.sflag [#allocation3], %s256
        %s258 = sand.u32 %s160, 1
        %s259 = smul.addr %s258, 136
        %s260 = scalar_lea.vmem [#allocation2], %s259
        %p261 = scmp.lt.s32.totalorder %s23, 1
        %s262 = scalar_select %p261, %s23, 1
        %p263 = scmp.lt.s32.totalorder %s24, 0
        %s264 = scalar_select %p263, %s24, 0
        %s265 = sadd.s32 %s264, %s262
        %s266 = smul.addr %s265, 8
        %s267 = scalar_lea.vmem %s0, %s266
        %p268 = scmp.lt.s32.totalorder %s23, 1
        %s269 = scalar_select %p268, %s23, 1
        %p270 = scmp.lt.s32.totalorder %s24, 0
        %s271 = scalar_select %p270, %s24, 0
        %s272 = smul.addr %s269, 2
        %s273 = sadd.s32 %s271, %s272
        %s274 = smul.addr %s273, 8
        %s275 = scalar_lea.vmem %s1, %s274
        %v276 = vld [vmem:[%s275] sm:$0xf]
        %v277 = vld [vmem:[%s275 + $0x4] sm:$0xf]
        %v278 = vmax.f32 %v276, %v277
        %v279 = vld [vmem:[%s275 + $0x8] sm:$0xf]
        %v280 = vld [vmem:[%s275 + $0xc] sm:$0xf]
        %v281 = vmax.f32 %v279, %v280
        %v282 = vmax.f32 %v278, %v281
        %v283 = vld [vmem:[%s2] sm:$0xf]
        %285 = vset.pattern.permute.xlu0 0
        %286 = vperm.xlu0 %285, %v283
        %v287 = vpop.permute.xlu0 %286
        %v289 = vmul.f32 %v282, %v287
        %v290 = vld [vmem:[%s3] sm:$0xf]
        %292 = vset.pattern.permute.xlu0 0
        %293 = vperm.xlu0 %292, %v290
        %v294 = vpop.permute.xlu0 %293
        %v296 = vadd.f32 %v289, %v294
        %v297 = vmax.f32 %v296, 0.0
        %v298 = vld [vmem:[%s4] sm:$0xff]
        %v299 = vld [vmem:[%s4 + $0x8] sm:$0xff]
        %v300 = vld [vmem:[%s4 + $0x10] sm:$0xff]
        %v301 = vld [vmem:[%s4 + $0x18] sm:$0xff]
        %v302 = vld [vmem:[%s4 + $0x20] sm:$0xff]
        %v303 = vld [vmem:[%s4 + $0x28] sm:$0xff]
        %v304 = vld [vmem:[%s4 + $0x30] sm:$0xff]
        %v305 = vld [vmem:[%s4 + $0x38] sm:$0xff]
        %v306 = vld [vmem:[%s4 + $0x40] sm:$0xff]
        %v307 = vld [vmem:[%s4 + $0x48] sm:$0xff]
        %v308 = vld [vmem:[%s4 + $0x50] sm:$0xff]
        %v309 = vld [vmem:[%s4 + $0x58] sm:$0xff]
        %v310 = vld [vmem:[%s4 + $0x60] sm:$0xff]
        %v311 = vld [vmem:[%s4 + $0x68] sm:$0xff]
        %v312 = vld [vmem:[%s4 + $0x70] sm:$0xff]
        %v313 = vld [vmem:[%s4 + $0x78] sm:$0xff]
        %315 = vset.pattern.permute.xlu0 0
        %316 = vperm.xlu0 %315, %v298
        %v317 = vpop.permute.xlu0 %316
        %320 = vset.pattern.permute.xlu0 0
        %321 = vperm.xlu0 %320, %v299
        %v322 = vpop.permute.xlu0 %321
        %325 = vset.pattern.permute.xlu0 0
        %326 = vperm.xlu0 %325, %v300
        %v327 = vpop.permute.xlu0 %326
        %330 = vset.pattern.permute.xlu0 0
        %331 = vperm.xlu0 %330, %v301
        %v332 = vpop.permute.xlu0 %331
        %335 = vset.pattern.permute.xlu0 0
        %336 = vperm.xlu0 %335, %v302
        %v337 = vpop.permute.xlu0 %336
        %340 = vset.pattern.permute.xlu0 0
        %341 = vperm.xlu0 %340, %v303
        %v342 = vpop.permute.xlu0 %341
        %345 = vset.pattern.permute.xlu0 0
        %346 = vperm.xlu0 %345, %v304
        %v347 = vpop.permute.xlu0 %346
        %350 = vset.pattern.permute.xlu0 0
        %351 = vperm.xlu0 %350, %v305
        %v352 = vpop.permute.xlu0 %351
        %355 = vset.pattern.permute.xlu0 0
        %356 = vperm.xlu0 %355, %v306
        %v357 = vpop.permute.xlu0 %356
        %360 = vset.pattern.permute.xlu0 0
        %361 = vperm.xlu0 %360, %v307
        %v362 = vpop.permute.xlu0 %361
        %365 = vset.pattern.permute.xlu0 0
        %366 = vperm.xlu0 %365, %v308
        %v367 = vpop.permute.xlu0 %366
        %370 = vset.pattern.permute.xlu0 0
        %371 = vperm.xlu0 %370, %v309
        %v372 = vpop.permute.xlu0 %371
        %375 = vset.pattern.permute.xlu0 0
        %376 = vperm.xlu0 %375, %v310
        %v377 = vpop.permute.xlu0 %376
        %380 = vset.pattern.permute.xlu0 0
        %381 = vperm.xlu0 %380, %v311
        %v382 = vpop.permute.xlu0 %381
        %385 = vset.pattern.permute.xlu0 0
        %386 = vperm.xlu0 %385, %v312
        %v387 = vpop.permute.xlu0 %386
        %390 = vset.pattern.permute.xlu0 0
        %391 = vperm.xlu0 %390, %v313
        %v392 = vpop.permute.xlu0 %391
        %v394 = vlaneseq
        %v395 = vshrl.u32 %v394, 7
        %v396 = vsub.s32 0, %v395
        %v397 = vrot.slane %v297, %v396
        %v398 = vmul.f32 %v317, %v397
        %v399 = vmul.f32 %v322, %v397
        %v400 = vmul.f32 %v327, %v397
        %v401 = vmul.f32 %v332, %v397
        %v402 = vmul.f32 %v337, %v397
        %v403 = vmul.f32 %v342, %v397
        %v404 = vmul.f32 %v347, %v397
        %v405 = vmul.f32 %v352, %v397
        %v406 = vmul.f32 %v357, %v397
        %v407 = vmul.f32 %v362, %v397
        %v408 = vmul.f32 %v367, %v397
        %v409 = vmul.f32 %v372, %v397
        %v410 = vmul.f32 %v377, %v397
        %v411 = vmul.f32 %v382, %v397
        %v412 = vmul.f32 %v387, %v397
        %v413 = vmul.f32 %v392, %v397
        %s414 = scalar_lea.vmem %s4, 128
        %v415 = vld [vmem:[%s414] sm:$0xff]
        %v416 = vld [vmem:[%s414 + $0x8] sm:$0xff]
        %v417 = vld [vmem:[%s414 + $0x10] sm:$0xff]
        %v418 = vld [vmem:[%s414 + $0x18] sm:$0xff]
        %v419 = vld [vmem:[%s414 + $0x20] sm:$0xff]
        %v420 = vld [vmem:[%s414 + $0x28] sm:$0xff]
        %v421 = vld [vmem:[%s414 + $0x30] sm:$0xff]
        %v422 = vld [vmem:[%s414 + $0x38] sm:$0xff]
        %v423 = vld [vmem:[%s414 + $0x40] sm:$0xff]
        %v424 = vld [vmem:[%s414 + $0x48] sm:$0xff]
        %v425 = vld [vmem:[%s414 + $0x50] sm:$0xff]
        %v426 = vld [vmem:[%s414 + $0x58] sm:$0xff]
        %v427 = vld [vmem:[%s414 + $0x60] sm:$0xff]
        %v428 = vld [vmem:[%s414 + $0x68] sm:$0xff]
        %v429 = vld [vmem:[%s414 + $0x70] sm:$0xff]
        %v430 = vld [vmem:[%s414 + $0x78] sm:$0xff]
        %432 = vset.pattern.permute.xlu0 0
        %433 = vperm.xlu0 %432, %v415
        %v434 = vpop.permute.xlu0 %433
        %437 = vset.pattern.permute.xlu0 0
        %438 = vperm.xlu0 %437, %v416
        %v439 = vpop.permute.xlu0 %438
        %442 = vset.pattern.permute.xlu0 0
        %443 = vperm.xlu0 %442, %v417
        %v444 = vpop.permute.xlu0 %443
        %447 = vset.pattern.permute.xlu0 0
        %448 = vperm.xlu0 %447, %v418
        %v449 = vpop.permute.xlu0 %448
        %452 = vset.pattern.permute.xlu0 0
        %453 = vperm.xlu0 %452, %v419
        %v454 = vpop.permute.xlu0 %453
        %457 = vset.pattern.permute.xlu0 0
        %458 = vperm.xlu0 %457, %v420
        %v459 = vpop.permute.xlu0 %458
        %462 = vset.pattern.permute.xlu0 0
        %463 = vperm.xlu0 %462, %v421
        %v464 = vpop.permute.xlu0 %463
        %467 = vset.pattern.permute.xlu0 0
        %468 = vperm.xlu0 %467, %v422
        %v469 = vpop.permute.xlu0 %468
        %472 = vset.pattern.permute.xlu0 0
        %473 = vperm.xlu0 %472, %v423
        %v474 = vpop.permute.xlu0 %473
        %477 = vset.pattern.permute.xlu0 0
        %478 = vperm.xlu0 %477, %v424
        %v479 = vpop.permute.xlu0 %478
        %482 = vset.pattern.permute.xlu0 0
        %483 = vperm.xlu0 %482, %v425
        %v484 = vpop.permute.xlu0 %483
        %487 = vset.pattern.permute.xlu0 0
        %488 = vperm.xlu0 %487, %v426
        %v489 = vpop.permute.xlu0 %488
        %492 = vset.pattern.permute.xlu0 0
        %493 = vperm.xlu0 %492, %v427
        %v494 = vpop.permute.xlu0 %493
        %497 = vset.pattern.permute.xlu0 0
        %498 = vperm.xlu0 %497, %v428
        %v499 = vpop.permute.xlu0 %498
        %502 = vset.pattern.permute.xlu0 0
        %503 = vperm.xlu0 %502, %v429
        %v504 = vpop.permute.xlu0 %503
        %507 = vset.pattern.permute.xlu0 0
        %508 = vperm.xlu0 %507, %v430
        %v509 = vpop.permute.xlu0 %508
        %v511 = vlaneseq
        %v512 = vshrl.u32 %v511, 7
        %v513 = vsub.s32 1, %v512
        %v514 = vrot.slane %v297, %v513
        %v515 = vmul.f32 %v434, %v514
        %v516 = vmul.f32 %v439, %v514
        %v517 = vmul.f32 %v444, %v514
        %v518 = vmul.f32 %v449, %v514
        %v519 = vmul.f32 %v454, %v514
        %v520 = vmul.f32 %v459, %v514
        %v521 = vmul.f32 %v464, %v514
        %v522 = vmul.f32 %v469, %v514
        %v523 = vmul.f32 %v474, %v514
        %v524 = vmul.f32 %v479, %v514
        %v525 = vmul.f32 %v484, %v514
        %v526 = vmul.f32 %v489, %v514
        %v527 = vmul.f32 %v494, %v514
        %v528 = vmul.f32 %v499, %v514
        %v529 = vmul.f32 %v504, %v514
        %v530 = vmul.f32 %v509, %v514
        %v531 = vadd.f32 %v398, %v515
        %v532 = vadd.f32 %v399, %v516
        %v533 = vadd.f32 %v400, %v517
        %v534 = vadd.f32 %v401, %v518
        %v535 = vadd.f32 %v402, %v519
        %v536 = vadd.f32 %v403, %v520
        %v537 = vadd.f32 %v404, %v521
        %v538 = vadd.f32 %v405, %v522
        %v539 = vadd.f32 %v406, %v523
        %v540 = vadd.f32 %v407, %v524
        %v541 = vadd.f32 %v408, %v525
        %v542 = vadd.f32 %v409, %v526
        %v543 = vadd.f32 %v410, %v527
        %v544 = vadd.f32 %v411, %v528
        %v545 = vadd.f32 %v412, %v529
        %v546 = vadd.f32 %v413, %v530
        %s547 = scalar_lea.vmem %s4, 256
        %v548 = vld [vmem:[%s547] sm:$0xff]
        %v549 = vld [vmem:[%s547 + $0x8] sm:$0xff]
        %v550 = vld [vmem:[%s547 + $0x10] sm:$0xff]
        %v551 = vld [vmem:[%s547 + $0x18] sm:$0xff]
        %v552 = vld [vmem:[%s547 + $0x20] sm:$0xff]
        %v553 = vld [vmem:[%s547 + $0x28] sm:$0xff]
        %v554 = vld [vmem:[%s547 + $0x30] sm:$0xff]
        %v555 = vld [vmem:[%s547 + $0x38] sm:$0xff]
        %v556 = vld [vmem:[%s547 + $0x40] sm:$0xff]
        %v557 = vld [vmem:[%s547 + $0x48] sm:$0xff]
        %v558 = vld [vmem:[%s547 + $0x50] sm:$0xff]
        %v559 = vld [vmem:[%s547 + $0x58] sm:$0xff]
        %v560 = vld [vmem:[%s547 + $0x60] sm:$0xff]
        %v561 = vld [vmem:[%s547 + $0x68] sm:$0xff]
        %v562 = vld [vmem:[%s547 + $0x70] sm:$0xff]
        %v563 = vld [vmem:[%s547 + $0x78] sm:$0xff]
        %565 = vset.pattern.permute.xlu0 0
        %566 = vperm.xlu0 %565, %v548
        %v567 = vpop.permute.xlu0 %566
        %570 = vset.pattern.permute.xlu0 0
        %571 = vperm.xlu0 %570, %v549
        %v572 = vpop.permute.xlu0 %571
        %575 = vset.pattern.permute.xlu0 0
        %576 = vperm.xlu0 %575, %v550
        %v577 = vpop.permute.xlu0 %576
        %580 = vset.pattern.permute.xlu0 0
        %581 = vperm.xlu0 %580, %v551
        %v582 = vpop.permute.xlu0 %581
        %585 = vset.pattern.permute.xlu0 0
        %586 = vperm.xlu0 %585, %v552
        %v587 = vpop.permute.xlu0 %586
        %590 = vset.pattern.permute.xlu0 0
        %591 = vperm.xlu0 %590, %v553
        %v592 = vpop.permute.xlu0 %591
        %595 = vset.pattern.permute.xlu0 0
        %596 = vperm.xlu0 %595, %v554
        %v597 = vpop.permute.xlu0 %596
        %600 = vset.pattern.permute.xlu0 0
        %601 = vperm.xlu0 %600, %v555
        %v602 = vpop.permute.xlu0 %601
        %605 = vset.pattern.permute.xlu0 0
        %606 = vperm.xlu0 %605, %v556
        %v607 = vpop.permute.xlu0 %606
        %610 = vset.pattern.permute.xlu0 0
        %611 = vperm.xlu0 %610, %v557
        %v612 = vpop.permute.xlu0 %611
        %615 = vset.pattern.permute.xlu0 0
        %616 = vperm.xlu0 %615, %v558
        %v617 = vpop.permute.xlu0 %616
        %620 = vset.pattern.permute.xlu0 0
        %621 = vperm.xlu0 %620, %v559
        %v622 = vpop.permute.xlu0 %621
        %625 = vset.pattern.permute.xlu0 0
        %626 = vperm.xlu0 %625, %v560
        %v627 = vpop.permute.xlu0 %626
        %630 = vset.pattern.permute.xlu0 0
        %631 = vperm.xlu0 %630, %v561
        %v632 = vpop.permute.xlu0 %631
        %635 = vset.pattern.permute.xlu0 0
        %636 = vperm.xlu0 %635, %v562
        %v637 = vpop.permute.xlu0 %636
        %640 = vset.pattern.permute.xlu0 0
        %641 = vperm.xlu0 %640, %v563
        %v642 = vpop.permute.xlu0 %641
        %v644 = vlaneseq
        %v645 = vshrl.u32 %v644, 7
        %v646 = vsub.s32 2, %v645
        %v647 = vrot.slane %v297, %v646
        %v648 = vmul.f32 %v567, %v647
        %v649 = vmul.f32 %v572, %v647
        %v650 = vmul.f32 %v577, %v647
        %v651 = vmul.f32 %v582, %v647
        %v652 = vmul.f32 %v587, %v647
        %v653 = vmul.f32 %v592, %v647
        %v654 = vmul.f32 %v597, %v647
        %v655 = vmul.f32 %v602, %v647
        %v656 = vmul.f32 %v607, %v647
        %v657 = vmul.f32 %v612, %v647
        %v658 = vmul.f32 %v617, %v647
        %v659 = vmul.f32 %v622, %v647
        %v660 = vmul.f32 %v627, %v647
        %v661 = vmul.f32 %v632, %v647
        %v662 = vmul.f32 %v637, %v647
        %v663 = vmul.f32 %v642, %v647
        %v664 = vadd.f32 %v531, %v648
        %v665 = vadd.f32 %v532, %v649
        %v666 = vadd.f32 %v533, %v650
        %v667 = vadd.f32 %v534, %v651
        %v668 = vadd.f32 %v535, %v652
        %v669 = vadd.f32 %v536, %v653
        %v670 = vadd.f32 %v537, %v654
        %v671 = vadd.f32 %v538, %v655
        %v672 = vadd.f32 %v539, %v656
        %v673 = vadd.f32 %v540, %v657
        %v674 = vadd.f32 %v541, %v658
        %v675 = vadd.f32 %v542, %v659
        %v676 = vadd.f32 %v543, %v660
        %v677 = vadd.f32 %v544, %v661
        %v678 = vadd.f32 %v545, %v662
        %v679 = vadd.f32 %v546, %v663
        %s680 = scalar_lea.vmem %s4, 384
        %v681 = vld [vmem:[%s680] sm:$0xff]
        %v682 = vld [vmem:[%s680 + $0x8] sm:$0xff]
        %v683 = vld [vmem:[%s680 + $0x10] sm:$0xff]
        %v684 = vld [vmem:[%s680 + $0x18] sm:$0xff]
        %v685 = vld [vmem:[%s680 + $0x20] sm:$0xff]
        %v686 = vld [vmem:[%s680 + $0x28] sm:$0xff]
        %v687 = vld [vmem:[%s680 + $0x30] sm:$0xff]
        %v688 = vld [vmem:[%s680 + $0x38] sm:$0xff]
        %v689 = vld [vmem:[%s680 + $0x40] sm:$0xff]
        %v690 = vld [vmem:[%s680 + $0x48] sm:$0xff]
        %v691 = vld [vmem:[%s680 + $0x50] sm:$0xff]
        %v692 = vld [vmem:[%s680 + $0x58] sm:$0xff]
        %v693 = vld [vmem:[%s680 + $0x60] sm:$0xff]
        %v694 = vld [vmem:[%s680 + $0x68] sm:$0xff]
        %v695 = vld [vmem:[%s680 + $0x70] sm:$0xff]
        %v696 = vld [vmem:[%s680 + $0x78] sm:$0xff]
        %698 = vset.pattern.permute.xlu0 0
        %699 = vperm.xlu0 %698, %v681
        %v700 = vpop.permute.xlu0 %699
        %703 = vset.pattern.permute.xlu0 0
        %704 = vperm.xlu0 %703, %v682
        %v705 = vpop.permute.xlu0 %704
        %708 = vset.pattern.permute.xlu0 0
        %709 = vperm.xlu0 %708, %v683
        %v710 = vpop.permute.xlu0 %709
        %713 = vset.pattern.permute.xlu0 0
        %714 = vperm.xlu0 %713, %v684
        %v715 = vpop.permute.xlu0 %714
        %718 = vset.pattern.permute.xlu0 0
        %719 = vperm.xlu0 %718, %v685
        %v720 = vpop.permute.xlu0 %719
        %723 = vset.pattern.permute.xlu0 0
        %724 = vperm.xlu0 %723, %v686
        %v725 = vpop.permute.xlu0 %724
        %728 = vset.pattern.permute.xlu0 0
        %729 = vperm.xlu0 %728, %v687
        %v730 = vpop.permute.xlu0 %729
        %733 = vset.pattern.permute.xlu0 0
        %734 = vperm.xlu0 %733, %v688
        %v735 = vpop.permute.xlu0 %734
        %738 = vset.pattern.permute.xlu0 0
        %739 = vperm.xlu0 %738, %v689
        %v740 = vpop.permute.xlu0 %739
        %743 = vset.pattern.permute.xlu0 0
        %744 = vperm.xlu0 %743, %v690
        %v745 = vpop.permute.xlu0 %744
        %748 = vset.pattern.permute.xlu0 0
        %749 = vperm.xlu0 %748, %v691
        %v750 = vpop.permute.xlu0 %749
        %753 = vset.pattern.permute.xlu0 0
        %754 = vperm.xlu0 %753, %v692
        %v755 = vpop.permute.xlu0 %754
        %758 = vset.pattern.permute.xlu0 0
        %759 = vperm.xlu0 %758, %v693
        %v760 = vpop.permute.xlu0 %759
        %763 = vset.pattern.permute.xlu0 0
        %764 = vperm.xlu0 %763, %v694
        %v765 = vpop.permute.xlu0 %764
        %768 = vset.pattern.permute.xlu0 0
        %769 = vperm.xlu0 %768, %v695
        %v770 = vpop.permute.xlu0 %769
        %773 = vset.pattern.permute.xlu0 0
        %774 = vperm.xlu0 %773, %v696
        %v775 = vpop.permute.xlu0 %774
        %v777 = vlaneseq
        %v778 = vshrl.u32 %v777, 7
        %v779 = vsub.s32 3, %v778
        %v780 = vrot.slane %v297, %v779
        %v781 = vmul.f32 %v700, %v780
        %v782 = vmul.f32 %v705, %v780
        %v783 = vmul.f32 %v710, %v780
        %v784 = vmul.f32 %v715, %v780
        %v785 = vmul.f32 %v720, %v780
        %v786 = vmul.f32 %v725, %v780
        %v787 = vmul.f32 %v730, %v780
        %v788 = vmul.f32 %v735, %v780
        %v789 = vmul.f32 %v740, %v780
        %v790 = vmul.f32 %v745, %v780
        %v791 = vmul.f32 %v750, %v780
        %v792 = vmul.f32 %v755, %v780
        %v793 = vmul.f32 %v760, %v780
        %v794 = vmul.f32 %v765, %v780
        %v795 = vmul.f32 %v770, %v780
        %v796 = vmul.f32 %v775, %v780
        %v797 = vadd.f32 %v664, %v781
        %v798 = vadd.f32 %v665, %v782
        %v799 = vadd.f32 %v666, %v783
        %v800 = vadd.f32 %v667, %v784
        %v801 = vadd.f32 %v668, %v785
        %v802 = vadd.f32 %v669, %v786
        %v803 = vadd.f32 %v670, %v787
        %v804 = vadd.f32 %v671, %v788
        %v805 = vadd.f32 %v672, %v789
        %v806 = vadd.f32 %v673, %v790
        %v807 = vadd.f32 %v674, %v791
        %v808 = vadd.f32 %v675, %v792
        %v809 = vadd.f32 %v676, %v793
        %v810 = vadd.f32 %v677, %v794
        %v811 = vadd.f32 %v678, %v795
        %v812 = vadd.f32 %v679, %v796
        %v813 = vld [vmem:[%s267] sm:$0xff]
        %814 = vst [vmem:[%s260] sm:$0xff] %v813
        %815 = vst [vmem:[%s260 + $0x8] sm:$0xff] %v797
        %816 = vst [vmem:[%s260 + $0x10] sm:$0xff] %v798
        %817 = vst [vmem:[%s260 + $0x18] sm:$0xff] %v799
        %818 = vst [vmem:[%s260 + $0x20] sm:$0xff] %v800
        %819 = vst [vmem:[%s260 + $0x28] sm:$0xff] %v801
        %820 = vst [vmem:[%s260 + $0x30] sm:$0xff] %v802
        %821 = vst [vmem:[%s260 + $0x38] sm:$0xff] %v803
        %822 = vst [vmem:[%s260 + $0x40] sm:$0xff] %v804
        %823 = vst [vmem:[%s260 + $0x48] sm:$0xff] %v805
        %824 = vst [vmem:[%s260 + $0x50] sm:$0xff] %v806
        %825 = vst [vmem:[%s260 + $0x58] sm:$0xff] %v807
        %826 = vst [vmem:[%s260 + $0x60] sm:$0xff] %v808
        %827 = vst [vmem:[%s260 + $0x68] sm:$0xff] %v809
        %828 = vst [vmem:[%s260 + $0x70] sm:$0xff] %v810
        %829 = vst [vmem:[%s260 + $0x78] sm:$0xff] %v811
        %830 = vst [vmem:[%s260 + $0x80] sm:$0xff] %v812
        %s831 = sand.u32 %s160, 1
        %s832 = scalar_lea.sflag [#allocation3], %s831
        %s833 = sand.u32 %s160, 1
        %s834 = smul.addr %s833, 136
        %s835 = scalar_lea.vmem [#allocation2], %s834
        // Predicated region
        $region41: #{tpu_custom_call.1} parent=39 // pred_check
          %p836 = pneg %p170
        $region42: #{tpu_custom_call.1} parent=39 // pred_check_branch
          %838 = sbr.rel (%p836) target = $region44
        $region43: #{tpu_custom_call.1} parent=39 // pred_region
          %s840 = ssub.s32 2176, 2176
          %841 = vsyncadd %s832, %s840
          %s842 = smul.addr %s23, 17
          %s843 = sadd.s32 %s24, %s842
          %s844 = smul.addr %s843, 128
          %s845 = scalar_lea.hbm %s5, %s844
          %s846 = sshll.u32 %s835, 4
          %s847 = int_to_ptr.vmem [resolvable:$true] %s846
          %852 = dma.vmem_to_hbm [thread:$0]  %s847, 2176, %s845, %s832, 128, 128, 8
        $region44: #{tpu_custom_call.1} parent=39 // pred_fallthru
          _
      $region40: #{tpu_custom_call.1} parent=5 // pred_fallthru
        _
      %p853 = scmp.le.s32.totalorder 2, %s14
      // Predicated region
      $region45: #{tpu_custom_call.1} parent=5 // pred_check
        %p854 = pneg %p853
      $region46: #{tpu_custom_call.1} parent=5 // pred_check_branch
        %856 = sbr.rel (%p854) target = $region48
      $region47: #{tpu_custom_call.1} parent=5 // pred_region
        %s857 = ssub.s32 %s14, 2
        // Predicated region
        $region49: #{tpu_custom_call.1} parent=47 // pred_check
          %p858 = pneg %p176
        $region50: #{tpu_custom_call.1} parent=47 // pred_check_branch
          %860 = sbr.rel (%p858) target = $region52
        $region51: #{tpu_custom_call.1} parent=47 // pred_region
          %s861 = sand.u32 %s161, 1
          %s862 = scalar_lea.sflag [#allocation3], %s861
          %s863 = sand.u32 %s161, 1
          %s864 = smul.addr %s863, 136
          %s865 = scalar_lea.vmem [#allocation2], %s864
          %866 = dma.done %s862, 2176
        $region52: #{tpu_custom_call.1} parent=47 // pred_fallthru
          _
      $region48: #{tpu_custom_call.1} parent=5 // pred_fallthru
        _
    $region6: #{tpu_custom_call.1} parent=1 // loop_footer
      %s18 = sadd.s32 1, %s14
    $region7: #{tpu_custom_call.1} parent=1 // loop_footer_branch
      %13 = sbr.rel target = $region3
    $region8: #{tpu_custom_call.1} parent=1 // loop_exit
      _
    %867 = vsyncpa [#allocation3], 1
    %s868 = scalar_lea.sflag [#allocation3], 1
    %869 = vsyncpa %s868, 1

</llo_original>
